<compile_context>
chip_gen: v7x
topology: tpu7x:2x2x1
jax: 0.10.0
libtpu: 0.0.40
codegen_flags: <defaults>
</compile_context>

<pallas_src>
import functools
import math

import jax
import jax.numpy as jnp
from jax import lax
from jax.experimental import pallas as pl
from jax.experimental.pallas import tpu as pltpu


def _round_up(x, m):
    return ((x + m - 1) // m) * m


def _embed_kernel(ids_ref, table_ref, pos_ref, out_ref, row_buf, sem, *,
                  scale, ts, vocab):
    """One tile of TS flattened (batch*seq) tokens.

    ids_ref  : SMEM (N_pad,) int32   scalar-prefetched token ids
    table_ref: HBM  (V, D)           embedding table (pl.ANY, manual DMA)
    pos_ref  : VMEM (TS, D)          positional-encoding rows for this tile
    out_ref  : VMEM (TS, D)          output tile
    row_buf  : VMEM (TS, D) scratch  gathered embedding rows
    sem      : DMA semaphore
    """
    base = pl.program_id(0) * ts

    # Issue one row DMA per token in this tile (gather from HBM).
    @pl.loop(0, ts)
    def _issue(i):
        row = ids_ref[base + i]
        row = jnp.clip(row, 0, vocab - 1)           # match jnp.take clipping
        pltpu.make_async_copy(table_ref.at[pl.ds(row, 1)],
                              row_buf.at[pl.ds(i, 1)],
                              sem).start()

    # Wait for all TS row copies (same-size descriptors on the same sem).
    @pl.loop(0, ts)
    def _wait(i):
        pltpu.make_async_copy(table_ref.at[pl.ds(0, 1)],
                              row_buf.at[pl.ds(i, 1)],
                              sem).wait()

    # TokenEmbedding scaling + positional add (VPU, f32), single full-width store.
    out = row_buf[...].astype(jnp.float32) * scale + pos_ref[...].astype(jnp.float32)
    out_ref[...] = out.astype(out_ref.dtype)


def transformer_embedding(token_ids, emb_table, pos_encoding):
    """token_ids: (B, S) int; emb_table: (V, D); pos_encoding: (max_len, D).

    Returns (B, S, D) = embedding(token_ids) * sqrt(D) + pos_encoding[:S]
    (batch_first=True layout of the PyTorch module).
    """
    B, S = token_ids.shape
    V, D = emb_table.shape
    max_len = pos_encoding.shape[0]
    assert S <= max_len, "sequence longer than positional-encoding table"

    # Fuse batch and sequence into one token axis; pad to a multiple of TS.
    N = B * S
    TS = min(256, _round_up(N, 8))
    N_pad = _round_up(N, TS)
    n_tiles = N_pad // TS

    ids_flat = token_ids.reshape(N).astype(jnp.int32)
    if N_pad != N:
        ids_flat = jnp.pad(ids_flat, (0, N_pad - N))       # pad with valid id 0

    pos_used = pos_encoding[:S].astype(jnp.float32)          # PyTorch [:seq_len] slice
    pos_flat = jnp.broadcast_to(pos_used[None], (B, S, D)).reshape(N, D)
    if N_pad != N:
        pos_flat = jnp.pad(pos_flat, ((0, N_pad - N), (0, 0)))

    scale = math.sqrt(float(D))
    itemsize = jnp.dtype(emb_table.dtype).itemsize

    # Generation-aware VMEM budget: double-buffered pos/out tiles + gather buf.
    try:
        vmem_cap = int(pltpu.get_tpu_info().vmem_capacity_bytes)
    except Exception:
        vmem_cap = 64 << 20                                  # conservative (v7x)
    work = 2 * TS * D * 4 + 2 * TS * D * itemsize + TS * D * itemsize
    vmem_bytes = int(max(16 << 20, min(2 * work + (8 << 20), vmem_cap - (8 << 20))))

    out_flat = pl.pallas_call(
        functools.partial(_embed_kernel, scale=scale, ts=TS, vocab=V),
        out_shape=jax.ShapeDtypeStruct((N_pad, D), emb_table.dtype),
        grid_spec=pltpu.PrefetchScalarGridSpec(
            num_scalar_prefetch=1,                           # ids -> SMEM
            grid=(n_tiles,),
            in_specs=[
                pl.BlockSpec(memory_space=pl.ANY),           # table stays in HBM
                pl.BlockSpec((TS, D), lambda t, ids: (t, 0)),  # positional rows
            ],
            out_specs=pl.BlockSpec((TS, D), lambda t, ids: (t, 0)),
            scratch_shapes=[
                pltpu.VMEM((TS, D), emb_table.dtype),        # gathered rows
                pltpu.SemaphoreType.DMA(()),                 # gather semaphore
            ],
        ),
        compiler_params=pltpu.CompilerParams(
            dimension_semantics=("parallel",),
            vmem_limit_bytes=vmem_bytes,
        ),
    )(ids_flat, emb_table, pos_flat)

    return out_flat[:N].reshape(B, S, D)


def make_positional_encoding(max_len, d_model, dtype=jnp.float32):
    """Same buffer the PyTorch PositionalEncoding precomputes at init."""
    position = jnp.arange(max_len, dtype=jnp.float32)[:, None]
    div_term = jnp.exp(
        jnp.arange(0, d_model, 2, dtype=jnp.float32) * (-(math.log(10000.0) / d_model))
    )
    enc = jnp.zeros((max_len, d_model), jnp.float32)
    enc = enc.at[:, 0::2].set(jnp.sin(position * div_term))
    enc = enc.at[:, 1::2].set(jnp.cos(position * div_term))
    return enc.astype(dtype)


def _reference(token_ids, emb_table, pos_encoding):
    """Pure-JAX reference for correctness checking."""
    S = token_ids.shape[1]
    D = emb_table.shape[1]
    tok = jnp.take(emb_table, token_ids, axis=0) * math.sqrt(float(D))
    return tok + pos_encoding[None, :S, :]


if __name__ == "__main__":
    B, S = 2, 8
    d_model, vocab_size, max_len = 32, 100, 64

    key = jax.random.PRNGKey(0)
    k_ids, k_emb = jax.random.split(key)

    token_ids = jax.random.randint(k_ids, (B, S), 0, vocab_size, dtype=jnp.int32)
    emb_table = jax.random.normal(k_emb, (vocab_size, d_model), jnp.float32)
    pos_enc = make_positional_encoding(max_len, d_model)

    out = transformer_embedding(token_ids, emb_table, pos_enc)
    jax.block_until_ready(out)

    ref = _reference(token_ids, emb_table, pos_enc)
    assert out.shape == (B, S, d_model)
    assert jnp.allclose(out, ref, atol=1e-5, rtol=1e-5)

    print("KERNEL_OK")
</pallas_src>

<mosaic_0001>
module attributes {stable_mosaic.version = 11 : i64} {
  func.func @_embed_kernel(%arg0: i32, %arg1: memref<16xi32, #tpu.memory_space<smem>>, %arg2: memref<100x32xf32, #tpu.memory_space<any>>, %arg3: memref<16x32xf32, #tpu.memory_space<vmem>>, %arg4: memref<16x32xf32, #tpu.memory_space<vmem>>, %arg5: memref<16x32xf32, #tpu.memory_space<vmem>>, %arg6: memref<!tpu.dma_semaphore, #tpu.memory_space<semaphore_mem>>) attributes {dimension_semantics = [#tpu.dimension_semantics<parallel>], iteration_bounds = array<i64: 1>, scalar_prefetch = 1 : i64, scratch_operands = 2 : i64, tpu.core_type = #tpu.core_type<tc>, window_params = [{}, {transform_indices = @transform_1, window_bounds = array<i64: 16, 32>}, {transform_indices = @transform_2, window_bounds = array<i64: 16, 32>}]} {
    %c16_i32 = arith.constant 16 : i32
    %0 = arith.muli %arg0, %c16_i32 : i32
    %c0_i32 = arith.constant 0 : i32
    %c16_i32_0 = arith.constant 16 : i32
    %1 = arith.addi %c0_i32, %c16_i32_0 : i32
    %c1_i32 = arith.constant 1 : i32
    scf.for %arg7 = %c0_i32 to %1 step %c1_i32  : i32 {
      %c1_i32_11 = arith.constant 1 : i32
      %9 = arith.muli %arg7, %c1_i32_11 : i32
      %c0_i32_12 = arith.constant 0 : i32
      %10 = arith.addi %c0_i32_12, %9 : i32
      %11 = arith.addi %0, %10 : i32
      %12 = arith.index_cast %11 : i32 to index
      %13 = memref.load %arg1[%12] : memref<16xi32, #tpu.memory_space<smem>>
      %c0_i32_13 = arith.constant 0 : i32
      %c99_i32 = arith.constant 99 : i32
      %14 = arith.maxsi %c0_i32_13, %13 : i32
      %15 = arith.minsi %c99_i32, %14 : i32
      %c0_i32_14 = arith.constant 0 : i32
      %16 = tpu.memref_slice %arg2[%15, %c0_i32_14] : memref<100x32xf32, #tpu.memory_space<any>> -> memref<1x32xf32, #tpu.memory_space<any>>
      %c0_i32_15 = arith.constant 0 : i32
      %17 = tpu.memref_slice %arg5[%10, %c0_i32_15] : memref<16x32xf32, #tpu.memory_space<vmem>> -> memref<1x32xf32, #tpu.memory_space<vmem>>
      tpu.enqueue_dma source(%16 : memref<1x32xf32, #tpu.memory_space<any>>) target(%17 : memref<1x32xf32, #tpu.memory_space<vmem>>) target_semaphore(%arg6 : memref<!tpu.dma_semaphore, #tpu.memory_space<semaphore_mem>>)
    }
    %c16_i32_1 = arith.constant 16 : i32
    %c0_i32_2 = arith.constant 0 : i32
    %c16_i32_3 = arith.constant 16 : i32
    %2 = arith.addi %c0_i32_2, %c16_i32_3 : i32
    %c1_i32_4 = arith.constant 1 : i32
    scf.for %arg7 = %c0_i32_2 to %2 step %c1_i32_4  : i32 {
      %c1_i32_11 = arith.constant 1 : i32
      %9 = arith.muli %arg7, %c1_i32_11 : i32
      %c0_i32_12 = arith.constant 0 : i32
      %10 = arith.addi %c0_i32_12, %9 : i32
      %c0_i32_13 = arith.constant 0 : i32
      %c0_i32_14 = arith.constant 0 : i32
      %11 = tpu.memref_slice %arg2[%c0_i32_13, %c0_i32_14] : memref<100x32xf32, #tpu.memory_space<any>> -> memref<1x32xf32, #tpu.memory_space<any>>
      %c0_i32_15 = arith.constant 0 : i32
      %12 = tpu.memref_slice %arg5[%10, %c0_i32_15] : memref<16x32xf32, #tpu.memory_space<vmem>> -> memref<1x32xf32, #tpu.memory_space<vmem>>
      tpu.wait_dma2 semaphore(%arg6 : memref<!tpu.dma_semaphore, #tpu.memory_space<semaphore_mem>>) src(%11 : memref<1x32xf32, #tpu.memory_space<any>>) dst(%12 : memref<1x32xf32, #tpu.memory_space<vmem>>)
    }
    %c16_i32_5 = arith.constant 16 : i32
    %c0 = arith.constant 0 : index
    %c0_6 = arith.constant 0 : index
    %3 = vector.load %arg5[%c0, %c0_6] : memref<16x32xf32, #tpu.memory_space<vmem>>, vector<16x32xf32>
    %cst = arith.constant 5.65685415 : f32
    %4 = vector.broadcast %cst : f32 to vector<16x32xf32>
    %5 = arith.mulf %3, %4 : vector<16x32xf32>
    %c0_7 = arith.constant 0 : index
    %c0_8 = arith.constant 0 : index
    %6 = vector.load %arg3[%c0_7, %c0_8] : memref<16x32xf32, #tpu.memory_space<vmem>>, vector<16x32xf32>
    %7 = arith.addf %5, %6 : vector<16x32xf32>
    %c0_9 = arith.constant 0 : index
    %c0_10 = arith.constant 0 : index
    %8 = vector.load %arg4[%c0_9, %c0_10] : memref<16x32xf32, #tpu.memory_space<vmem>>, vector<16x32xf32>
    tpu.vector_store %arg4[%c0_9, %c0_10], %7 {strides = array<i32>} : memref<16x32xf32, #tpu.memory_space<vmem>>, vector<16x32xf32>,
    return
  }
  func.func @transform_1(%arg0: i32, %arg1: memref<16xi32, #tpu.memory_space<smem>>) -> (i32, i32) {
    %c0_i32 = arith.constant 0 : i32
    %c0_i32_0 = arith.constant 0 : i32
    return %arg0, %c0_i32 : i32, i32
  }
  func.func @transform_2(%arg0: i32, %arg1: memref<16xi32, #tpu.memory_space<smem>>) -> (i32, i32) {
    %c0_i32 = arith.constant 0 : i32
    %c0_i32_0 = arith.constant 0 : i32
    return %arg0, %c0_i32 : i32, i32
  }
}

</mosaic_0001>

<llo_original>
// kernel: tpu_custom_call.1
$region0: #{tpu_custom_call.1}
  #allocation0 [shape = 'u32[]', space=smem, size = 0x4, offset = 0x4, fixed_abs, tag = 'smem constant byte address 0x4 - core index']
  #allocation1 [shape = 'u32[144,128]{1,0:T(1,128)}', space=vmem, size = 0x12000, scoped, tag = 'internal scratch']
  #allocation2 [shape = 'f32[16,32]{1,0:T(8,128)}', space=vmem, size = 0x2000, scoped, tag = 'scratch operand']
  #allocation3 [shape = 's32[1]{0}', space=sflag, size = 0x4, scoped, tag = 'scratch operand']
  #allocation4 [shape = 's32[1]{0}', space=sflag, size = 0x4, scoped, tag = 'scoped memory for tpu_custom_call.1']
  #allocation5 [shape = 'u8[512]{0}', space=smem, size = 0x200, scoped, tag = 'prefetched SMEM operand 0']
  #allocation8 [shape = 's32[]', space=sflag, size = 0x4, offset = 0, fixed_abs, tag = 'sflag constant byte address 0x0 - dummy sync flag']
  %s0 = inlined_call_operand.vmem [shape: s32[16], index: 0, kind: input, shape index: {}]
  %s1 = inlined_call_operand.vmem [shape: f32[100,32], index: 1, kind: input, shape index: {}]
  %s2 = inlined_call_operand.vmem [shape: f32[16,32], index: 2, kind: input, shape index: {}]
  %s3 = inlined_call_operand.hbm [shape: f32[16,32], index: 3, kind: output, shape index: {}]
  %s4 = sld [smem:[#allocation0]]
  $region58: #{tpu_custom_call.1} parent=0
    _
  %s6 = ssub.s32 1, %s4
  %s7 = scalar_select 0, %s6, %s4
  %s8 = sshll.u32 %s0, 4
  %s9 = int_to_ptr.vmem [resolvable:$true] %s8
  %11 = dma.vmem_to_smem %s9, 16, [#allocation5], [#allocation4]
  %12 = dma.done [#allocation4], 16
  %13 = sfence
  $region1: #{tpu_custom_call.1} parent=0
    #allocation6 [shape = 'u8[8192]{0}', space=vmem, size = 0x2000, scoped, tag = 'output window, operand 0, single buffered']
    #allocation7 [shape = 's32[1]{0}', space=sflag, size = 0x4, scoped, tag = 'scoped memory for tpu_custom_call.1']
    %14 = vsyncpa [#allocation7], 0
    // Predicated region
    $region2: #{tpu_custom_call.1} parent=1 // pred_check
      _
    $region3: #{tpu_custom_call.1} parent=1 // pred_check_branch
      %16 = sbr.rel (0) target = $region5
    $region4: #{tpu_custom_call.1} parent=1 // pred_region
      _
    $region5: #{tpu_custom_call.1} parent=1 // pred_fallthru
      _
    %s17 = smul.u32 0, 16
    loop: start=0, step=1, limit=16
    $region6: #{tpu_custom_call.1} parent=1 // loop_pre_header
      _
    $region7: #{tpu_custom_call.1} parent=1 // loop_header
      %s19 = sphi 0, %s23
      %p20 = scmp.ge.s32.totalorder %s19, 16
    $region8: #{tpu_custom_call.1} parent=1 // loop_header_branch
      %22 = sbr.rel (%p20) target = $region12
    $region9: #{tpu_custom_call.1} parent=1 // loop_body
      %s24 = sadd.s32 %s17, %s19
      %s25 = sld [smem:[#allocation5 + %s24]]
      %p26 = scmp.gt.s32.totalorder %s25, 0
      %s27 = scalar_select %p26, %s25, 0
      %p28 = scmp.lt.s32.totalorder %s27, 99
      %s29 = scalar_select %p28, %s27, 99
      %s30 = scalar_lea.vmem %s1, %s29
      %s31 = scalar_lea.vmem [#allocation2], %s19
      %p33 = scmp.lt.u32.totalorder 1, 8
      %p34 = pneg %p33
      // Predicated region
      $region13: #{tpu_custom_call.1} parent=9 // pred_check
        _
      $region14: #{tpu_custom_call.1} parent=9 // pred_check_branch
        %36 = sbr.rel (%p33) target = $region16
      $region15: #{tpu_custom_call.1} parent=9 // pred_region
        %s51 = sand.u32 1, 7
        %p52 = scmp.eq.s32.totalorder %s51, 0
        %p53 = pneg %p52
        // Predicated region
        $region28: #{tpu_custom_call.1} parent=15 // pred_check
          _
        $region29: #{tpu_custom_call.1} parent=15 // pred_check_branch
          %55 = sbr.rel (%p52) target = $region31
        $region30: #{tpu_custom_call.1} parent=15 // pred_region
          %s56 = sand.u32 1, 7
          %s57 = ssub.s32 1, %s56
          %s58 = scalar_lea.vmem %s30, %s57
          %s59 = ssub.s32 1, %s56
          %s60 = scalar_lea.vmem %s31, %s59 [#allocation2]
          %s61 = sshllo.u32 0, %s56
          loop: start=0, step=1, limit=1
          $region32: #{tpu_custom_call.1} parent=30 // loop_pre_header
            _
          $region33: #{tpu_custom_call.1} parent=30 // loop_header
            %s63 = sphi 0, %s67
            %p64 = scmp.ge.s32.totalorder %s63, 1
            %s68 = sphi %s58, %s58
            %s69 = sphi %s60, %s60
          $region34: #{tpu_custom_call.1} parent=30 // loop_header_branch
            %66 = sbr.rel (%p64) target = $region38
          $region35: #{tpu_custom_call.1} parent=30 // loop_body
            %v70 = vld [vmem:[%s68] sm:%s61]
            %71 = vst [vmem:[%s69] sm:%s61] %v70
          $region36: #{tpu_custom_call.1} parent=30 // loop_footer
            %s67 = sadd.s32 1, %s63
          $region37: #{tpu_custom_call.1} parent=30 // loop_footer_branch
            %62 = sbr.rel target = $region33
          $region38: #{tpu_custom_call.1} parent=30 // loop_exit
            _
        $region31: #{tpu_custom_call.1} parent=15 // pred_fallthru
          _
      $region16: #{tpu_custom_call.1} parent=9 // pred_fallthru
        _
      // Predicated region
      $region17: #{tpu_custom_call.1} parent=9 // pred_check
        %p37 = pneg %p33
      $region18: #{tpu_custom_call.1} parent=9 // pred_check_branch
        %39 = sbr.rel (%p37) target = $region20
      $region19: #{tpu_custom_call.1} parent=9 // pred_region
        %s40 = sshllo.u32 0, 1
        loop: start=0, step=1, limit=1
        $region21: #{tpu_custom_call.1} parent=19 // loop_pre_header
          _
        $region22: #{tpu_custom_call.1} parent=19 // loop_header
          %s42 = sphi 0, %s46
          %p43 = scmp.ge.s32.totalorder %s42, 1
          %s47 = sphi %s30, %s30
          %s48 = sphi %s31, %s31
        $region23: #{tpu_custom_call.1} parent=19 // loop_header_branch
          %45 = sbr.rel (%p43) target = $region27
        $region24: #{tpu_custom_call.1} parent=19 // loop_body
          %v49 = vld [vmem:[%s47] sm:%s40]
          %50 = vst [vmem:[%s48] sm:%s40] %v49
        $region25: #{tpu_custom_call.1} parent=19 // loop_footer
          %s46 = sadd.s32 1, %s42
        $region26: #{tpu_custom_call.1} parent=19 // loop_footer_branch
          %41 = sbr.rel target = $region22
        $region27: #{tpu_custom_call.1} parent=19 // loop_exit
          _
      $region20: #{tpu_custom_call.1} parent=9 // pred_fallthru
        _
      // Predicated region
      $region39: #{tpu_custom_call.1} parent=9 // pred_check
        _
      $region40: #{tpu_custom_call.1} parent=9 // pred_check_branch
        %74 = sbr.rel (0) target = $region42
      $region41: #{tpu_custom_call.1} parent=9 // pred_region
        %75 = vsyncadd [#allocation3], 16
      $region42: #{tpu_custom_call.1} parent=9 // pred_fallthru
        _
    $region10: #{tpu_custom_call.1} parent=1 // loop_footer
      %s23 = sadd.s32 1, %s19
    $region11: #{tpu_custom_call.1} parent=1 // loop_footer_branch
      %18 = sbr.rel target = $region7
    $region12: #{tpu_custom_call.1} parent=1 // loop_exit
      _
    loop: start=0, step=1, limit=16
    $region43: #{tpu_custom_call.1} parent=1 // loop_pre_header
      _
    $region44: #{tpu_custom_call.1} parent=1 // loop_header
      %s77 = sphi 0, %s81
      %p78 = scmp.ge.s32.totalorder %s77, 16
    $region45: #{tpu_custom_call.1} parent=1 // loop_header_branch
      %80 = sbr.rel (%p78) target = $region49
    $region46: #{tpu_custom_call.1} parent=1 // loop_body
      %s82 = smul.u32 1, 1
      %s83 = sshll.u32 %s82, 4
      %84 = dma.done [#allocation3], %s83
    $region47: #{tpu_custom_call.1} parent=1 // loop_footer
      %s81 = sadd.s32 1, %s77
    $region48: #{tpu_custom_call.1} parent=1 // loop_footer_branch
      %76 = sbr.rel target = $region44
    $region49: #{tpu_custom_call.1} parent=1 // loop_exit
      _
    %v85 = vld [vmem:[#allocation2] sm:$0xff]
    %v86 = vld [vmem:[#allocation2 + $0x8] sm:$0xff]
    %v87 = vmul.f32 %v85, 5.656854
    %v88 = vmul.f32 %v86, 5.656854
    %v89 = vld [vmem:[%s2] sm:$0xff]
    %v90 = vld [vmem:[%s2 + $0x8] sm:$0xff]
    %v91 = vadd.f32 %v87, %v89
    %v92 = vadd.f32 %v88, %v90
    %vm93 = vcmask 261120
    %94 = vst.msk [vmem:[#allocation6] sm:$0xff] %vm93, %v91
    %95 = vst.msk [vmem:[#allocation6 + $0x8] sm:$0xff] %vm93, %v92
    // Predicated region
    $region50: #{tpu_custom_call.1} parent=1 // pred_check
      _
    $region51: #{tpu_custom_call.1} parent=1 // pred_check_branch
      %97 = sbr.rel (0) target = $region53
    $region52: #{tpu_custom_call.1} parent=1 // pred_region
      %s99 = ssub.s32 256, 256
      %100 = vsyncadd [#allocation7], %s99
      %s101 = sshll.u32 [#allocation6], 4
      %s102 = int_to_ptr.vmem [resolvable:$true] %s101
      %107 = dma.vmem_to_hbm [thread:$0]  %s102, 256, %s3, [#allocation7], 128, 128, 8
    $region53: #{tpu_custom_call.1} parent=1 // pred_fallthru
      _
    // Predicated region
    $region54: #{tpu_custom_call.1} parent=1 // pred_check
      _
    $region55: #{tpu_custom_call.1} parent=1 // pred_check_branch
      %109 = sbr.rel (0) target = $region57
    $region56: #{tpu_custom_call.1} parent=1 // pred_region
      %110 = dma.done [#allocation7], 256
    $region57: #{tpu_custom_call.1} parent=1 // pred_fallthru
      _
    %111 = vsyncpa [#allocation7], 1
  %112 = vsyncmov [#allocation3]
  %s113 = vpop.sfrf %112
  %p114 = scmp.eq.s32.totalorder %s113, 0
  %p115 = pneg %p114
  %117 = shalt.err (%p115)

</llo_original>
